<compile_context>
chip_gen: v6e
topology: v6e:2x2x1
jax: 0.10.0
libtpu: 0.0.40
codegen_flags: <defaults>
</compile_context>

<pallas_src>
import functools

import jax
import jax.numpy as jnp
from jax.experimental import pallas as pl
from jax.experimental.pallas import tpu as pltpu

_LANE = 128     # lane width — hidden (intermediate) dims padded to a multiple of this
_SUBLANE = 8    # sublane — batch tile kept a multiple of this


def _round_up(n, m):
    return ((n + m - 1) // m) * m


def _fused_mlp_kernel(x_ref, *refs, n_layers):
    """refs = (w0, b0, w1, b1, ..., w_{L-1}, b_{L-1}, out)."""
    out_ref = refs[-1]
    wb = refs[:-1]
    h = x_ref[...]                                        # (tile_b, in_dim) f32
    for i in range(n_layers):                             # statically unrolled
        w = wb[2 * i][...]                                # bf16 (in_i, out_i)
        b = wb[2 * i + 1][...]                            # f32  (1, out_i)
        # bf16 MXU inputs, f32 accumulation; bias-add / ReLU in f32.
        h = jnp.dot(h.astype(jnp.bfloat16), w,
                    preferred_element_type=jnp.float32) + b
        if i != n_layers - 1:
            h = jnp.maximum(h, 0.0)
    out_ref[...] = h.astype(out_ref.dtype)


def stitch_rnet_forward(x, params, *, tile_b=512):
    """x: [batch, input_size] float32; params: list of (w [in,out], b [1,out]).

    Mirrors nn.Sequential([Linear, ReLU] * len(hidden_sizes), Linear).
    """
    B, in_dim = x.shape
    n_layers = len(params)
    out_dim = params[-1][0].shape[1]

    # Layer widths: keep input and output feature dims unpadded (full-extent
    # BlockSpec dims); lane-pad only the hidden widths (intermediates).
    dims = [in_dim] + [w.shape[1] for (w, _b) in params]
    dims_p = [in_dim] + [_round_up(d, _LANE) for d in dims[1:-1]] + [out_dim]

    # Batch tiling: multiple of 8 sublanes, capped at the (rounded-up) batch.
    tile_b = max(_SUBLANE,
                 min(_round_up(tile_b, _SUBLANE), _round_up(B, _SUBLANE)))
    grid = (pl.cdiv(B, tile_b),)      # ragged last tile handled by Pallas

    # Weight/bias prep: exact zero padding of hidden dims only; weights bf16.
    flat_params = []
    for i, (w, b) in enumerate(params):
        in_p, out_p = dims_p[i], dims_p[i + 1]
        w_p = jnp.zeros((in_p, out_p), jnp.float32)
        w_p = w_p.at[: w.shape[0], : w.shape[1]].set(w)
        b_p = jnp.zeros((1, out_p), jnp.float32)
        b_p = b_p.at[:, : b.shape[-1]].set(b.reshape(1, -1))
        flat_params += [w_p.astype(jnp.bfloat16), b_p]

    # BlockSpecs: x/out batch-tiled with full-extent feature dims; weights and
    # biases are grid-invariant full-array blocks (VMEM-resident, ~KiB total).
    in_specs = [pl.BlockSpec((tile_b, in_dim), lambda i: (i, 0))]
    for li in range(n_layers):
        in_specs.append(
            pl.BlockSpec((dims_p[li], dims_p[li + 1]), lambda i: (0, 0)))
        in_specs.append(
            pl.BlockSpec((1, dims_p[li + 1]), lambda i: (0, 0)))
    out_specs = pl.BlockSpec((tile_b, out_dim), lambda i: (i, 0))

    kernel = functools.partial(_fused_mlp_kernel, n_layers=n_layers)

    out = pl.pallas_call(
        kernel,
        out_shape=jax.ShapeDtypeStruct((B, out_dim), jnp.float32),
        grid_spec=pl.GridSpec(
            grid=grid,
            in_specs=in_specs,
            out_specs=out_specs,
        ),
        compiler_params=pltpu.CompilerParams(
            # Batch tiles are independent -> shard across TCs on v7x megacore.
            dimension_semantics=("parallel",),
        ),
    )(x, *flat_params)
    return out


def init_stitch_rnet_params(key, input_size, hidden_sizes, output_size):
    """Deterministic PyTorch-style (Kaiming-uniform-ish) init for every Linear."""
    dims = [input_size] + list(hidden_sizes) + [output_size]
    params = []
    for i in range(len(dims) - 1):
        fan_in, fan_out = dims[i], dims[i + 1]
        key, kw, kb = jax.random.split(key, 3)
        bound = 1.0 / (fan_in ** 0.5)
        w = jax.random.uniform(kw, (fan_in, fan_out), jnp.float32, -bound, bound)
        b = jax.random.uniform(kb, (1, fan_out), jnp.float32, -bound, bound)
        params.append((w, b))
    return params


def _reference_forward_bf16(x, params):
    """Pure-JAX reference mimicking the kernel's bf16-in / f32-accumulate math."""
    h = x
    n = len(params)
    for i, (w, b) in enumerate(params):
        h = jnp.dot(h.astype(jnp.bfloat16), w.astype(jnp.bfloat16),
                    preferred_element_type=jnp.float32) + b.reshape(1, -1)
        if i != n - 1:
            h = jnp.maximum(h, 0.0)
    return h


def _reference_forward_f32(x, params):
    h = x
    n = len(params)
    for i, (w, b) in enumerate(params):
        h = h @ w + b.reshape(1, -1)
        if i != n - 1:
            h = jnp.maximum(h, 0.0)
    return h


if __name__ == "__main__":
    key = jax.random.PRNGKey(0)
    input_size = 16
    hidden_sizes = [32, 32]
    output_size = 8
    batch = 2

    key, kx, kx2 = jax.random.split(key, 3)
    x = jax.random.normal(kx, (batch, input_size), jnp.float32)
    params = init_stitch_rnet_params(key, input_size, hidden_sizes, output_size)

    # Small demo batch (single grid tile).
    out = stitch_rnet_forward(x, params)
    out = jax.block_until_ready(out)
    assert out.shape == (batch, output_size), out.shape
    ref_bf16 = _reference_forward_bf16(x, params)
    ref_f32 = _reference_forward_f32(x, params)
    assert jnp.allclose(out, ref_bf16, atol=1e-3, rtol=1e-3), float(
        jnp.max(jnp.abs(out - ref_bf16)))
    assert jnp.allclose(out, ref_f32, atol=5e-2, rtol=5e-2), float(
        jnp.max(jnp.abs(out - ref_f32)))

    # Larger batch: exercises the cdiv grid (ragged last tile) and >=2 tiles.
    batch2 = 1000
    x2 = jax.random.normal(kx2, (batch2, input_size), jnp.float32)
    out2 = jax.block_until_ready(stitch_rnet_forward(x2, params))
    ref2 = _reference_forward_bf16(x2, params)
    assert out2.shape == (batch2, output_size), out2.shape
    assert jnp.allclose(out2, ref2, atol=1e-3, rtol=1e-3), float(
        jnp.max(jnp.abs(out2 - ref2)))

    print("KERNEL_OK")
</pallas_src>

<mosaic_0001>
module attributes {stable_mosaic.version = 11 : i64} {
  func.func @_fused_mlp_kernel(%arg0: i32, %arg1: memref<8x16xf32, #tpu.memory_space<vmem>>, %arg2: memref<16x128xbf16, #tpu.memory_space<vmem>>, %arg3: memref<1x128xf32, #tpu.memory_space<vmem>>, %arg4: memref<128x128xbf16, #tpu.memory_space<vmem>>, %arg5: memref<1x128xf32, #tpu.memory_space<vmem>>, %arg6: memref<128x8xbf16, #tpu.memory_space<vmem>>, %arg7: memref<1x8xf32, #tpu.memory_space<vmem>>, %arg8: memref<8x8xf32, #tpu.memory_space<vmem>>) attributes {dimension_semantics = [#tpu.dimension_semantics<parallel>], iteration_bounds = array<i64: 1>, scalar_prefetch = 0 : i64, scratch_operands = 0 : i64, tpu.core_type = #tpu.core_type<tc>, window_params = [{transform_indices = @transform_0, window_bounds = array<i64: 8, 16>}, {pipeline_mode = #tpu.pipeline_mode<synchronous>, transform_indices = @transform_1, window_bounds = array<i64: 16, 128>}, {pipeline_mode = #tpu.pipeline_mode<synchronous>, transform_indices = @transform_2, window_bounds = array<i64: 1, 128>}, {pipeline_mode = #tpu.pipeline_mode<synchronous>, transform_indices = @transform_3, window_bounds = array<i64: 128, 128>}, {pipeline_mode = #tpu.pipeline_mode<synchronous>, transform_indices = @transform_4, window_bounds = array<i64: 1, 128>}, {pipeline_mode = #tpu.pipeline_mode<synchronous>, transform_indices = @transform_5, window_bounds = array<i64: 128, 8>}, {pipeline_mode = #tpu.pipeline_mode<synchronous>, transform_indices = @transform_6, window_bounds = array<i64: 1, 8>}, {transform_indices = @transform_7, window_bounds = array<i64: 8, 8>}]} {
    %c0 = arith.constant 0 : index
    %c0_0 = arith.constant 0 : index
    %0 = vector.load %arg1[%c0, %c0_0] : memref<8x16xf32, #tpu.memory_space<vmem>>, vector<8x16xf32>
    %c0_1 = arith.constant 0 : index
    %c0_2 = arith.constant 0 : index
    %1 = vector.load %arg2[%c0_1, %c0_2] : memref<16x128xbf16, #tpu.memory_space<vmem>>, vector<16x128xbf16>
    %c0_3 = arith.constant 0 : index
    %c0_4 = arith.constant 0 : index
    %2 = vector.load %arg3[%c0_3, %c0_4] : memref<1x128xf32, #tpu.memory_space<vmem>>, vector<1x128xf32>
    %3 = arith.truncf %0 : vector<8x16xf32> to vector<8x16xbf16>
    %cst = arith.constant dense<0.000000e+00> : vector<8x128xf32>
    %4 = tpu.matmul %3, %1, %cst {dimension_numbers = #tpu.dot_dimension_numbers<[1], [0], [0], [1], [0, 0, 1, 1], [], []>} : vector<8x16xbf16>, vector<16x128xbf16>, vector<8x128xf32> -> vector<8x128xf32>
    %5 = vector.broadcast %2 : vector<1x128xf32> to vector<8x128xf32>
    %6 = arith.addf %4, %5 : vector<8x128xf32>
    %cst_5 = arith.constant 0.000000e+00 : f32
    %7 = vector.broadcast %cst_5 : f32 to vector<8x128xf32>
    %8 = arith.maximumf %6, %7 : vector<8x128xf32>
    %c0_6 = arith.constant 0 : index
    %c0_7 = arith.constant 0 : index
    %9 = vector.load %arg4[%c0_6, %c0_7] : memref<128x128xbf16, #tpu.memory_space<vmem>>, vector<128x128xbf16>
    %c0_8 = arith.constant 0 : index
    %c0_9 = arith.constant 0 : index
    %10 = vector.load %arg5[%c0_8, %c0_9] : memref<1x128xf32, #tpu.memory_space<vmem>>, vector<1x128xf32>
    %11 = arith.truncf %8 : vector<8x128xf32> to vector<8x128xbf16>
    %cst_10 = arith.constant dense<0.000000e+00> : vector<8x128xf32>
    %12 = tpu.matmul %11, %9, %cst_10 {dimension_numbers = #tpu.dot_dimension_numbers<[1], [0], [0], [1], [0, 0, 1, 1], [], []>} : vector<8x128xbf16>, vector<128x128xbf16>, vector<8x128xf32> -> vector<8x128xf32>
    %13 = vector.broadcast %10 : vector<1x128xf32> to vector<8x128xf32>
    %14 = arith.addf %12, %13 : vector<8x128xf32>
    %cst_11 = arith.constant 0.000000e+00 : f32
    %15 = vector.broadcast %cst_11 : f32 to vector<8x128xf32>
    %16 = arith.maximumf %14, %15 : vector<8x128xf32>
    %c0_12 = arith.constant 0 : index
    %c0_13 = arith.constant 0 : index
    %17 = vector.load %arg6[%c0_12, %c0_13] : memref<128x8xbf16, #tpu.memory_space<vmem>>, vector<128x8xbf16>
    %c0_14 = arith.constant 0 : index
    %c0_15 = arith.constant 0 : index
    %18 = vector.load %arg7[%c0_14, %c0_15] : memref<1x8xf32, #tpu.memory_space<vmem>>, vector<1x8xf32>
    %19 = arith.truncf %16 : vector<8x128xf32> to vector<8x128xbf16>
    %cst_16 = arith.constant dense<0.000000e+00> : vector<8x8xf32>
    %20 = tpu.matmul %19, %17, %cst_16 {dimension_numbers = #tpu.dot_dimension_numbers<[1], [0], [0], [1], [0, 0, 1, 1], [], []>} : vector<8x128xbf16>, vector<128x8xbf16>, vector<8x8xf32> -> vector<8x8xf32>
    %21 = vector.broadcast %18 : vector<1x8xf32> to vector<8x8xf32>
    %22 = arith.addf %20, %21 : vector<8x8xf32>
    %c0_17 = arith.constant 0 : index
    %c0_18 = arith.constant 0 : index
    %23 = vector.load %arg8[%c0_17, %c0_18] : memref<8x8xf32, #tpu.memory_space<vmem>>, vector<8x8xf32>
    tpu.vector_store %arg8[%c0_17, %c0_18], %22 {strides = array<i32>} : memref<8x8xf32, #tpu.memory_space<vmem>>, vector<8x8xf32>,
    return
  }
  func.func @transform_0(%arg0: i32) -> (i32, i32) {
    %c0_i32 = arith.constant 0 : i32
    %c0_i32_0 = arith.constant 0 : i32
    return %arg0, %c0_i32 : i32, i32
  }
  func.func @transform_1(%arg0: i32) -> (i32, i32) {
    %c0_i32 = arith.constant 0 : i32
    %c0_i32_0 = arith.constant 0 : i32
    %c0_i32_1 = arith.constant 0 : i32
    return %c0_i32, %c0_i32_0 : i32, i32
  }
  func.func @transform_2(%arg0: i32) -> (i32, i32) {
    %c0_i32 = arith.constant 0 : i32
    %c0_i32_0 = arith.constant 0 : i32
    %c0_i32_1 = arith.constant 0 : i32
    return %c0_i32, %c0_i32_0 : i32, i32
  }
  func.func @transform_3(%arg0: i32) -> (i32, i32) {
    %c0_i32 = arith.constant 0 : i32
    %c0_i32_0 = arith.constant 0 : i32
    %c0_i32_1 = arith.constant 0 : i32
    return %c0_i32, %c0_i32_0 : i32, i32
  }
  func.func @transform_4(%arg0: i32) -> (i32, i32) {
    %c0_i32 = arith.constant 0 : i32
    %c0_i32_0 = arith.constant 0 : i32
    %c0_i32_1 = arith.constant 0 : i32
    return %c0_i32, %c0_i32_0 : i32, i32
  }
  func.func @transform_5(%arg0: i32) -> (i32, i32) {
    %c0_i32 = arith.constant 0 : i32
    %c0_i32_0 = arith.constant 0 : i32
    %c0_i32_1 = arith.constant 0 : i32
    return %c0_i32, %c0_i32_0 : i32, i32
  }
  func.func @transform_6(%arg0: i32) -> (i32, i32) {
    %c0_i32 = arith.constant 0 : i32
    %c0_i32_0 = arith.constant 0 : i32
    %c0_i32_1 = arith.constant 0 : i32
    return %c0_i32, %c0_i32_0 : i32, i32
  }
  func.func @transform_7(%arg0: i32) -> (i32, i32) {
    %c0_i32 = arith.constant 0 : i32
    %c0_i32_0 = arith.constant 0 : i32
    return %arg0, %c0_i32 : i32, i32
  }
}

</mosaic_0001>

<llo_original>
// kernel: tpu_custom_call.1
$region0: #{tpu_custom_call.1}
  #allocation0 [shape = 'u32[]', space=smem, size = 0x4, offset = 0x4, fixed_abs, tag = 'smem constant byte address 0x4 - core index']
  #allocation1 [shape = 'u32[144,128]{1,0:T(1,128)}', space=vmem, size = 0x12000, scoped, tag = 'internal scratch']
  %s0 = inlined_call_operand.hbm [shape: f32[2,16], index: 0, kind: input, shape index: {}]
  %s1 = inlined_call_operand.vmem [shape: bf16[16,128], index: 1, kind: input, shape index: {}]
  %s2 = inlined_call_operand.vmem [shape: f32[1,128], index: 2, kind: input, shape index: {}]
  %s3 = inlined_call_operand.vmem [shape: bf16[128,128], index: 3, kind: input, shape index: {}]
  %s4 = inlined_call_operand.hbm [shape: f32[1,128], index: 4, kind: input, shape index: {}]
  %s5 = inlined_call_operand.vmem [shape: bf16[128,8], index: 5, kind: input, shape index: {}]
  %s6 = inlined_call_operand.vmem [shape: f32[1,8], index: 6, kind: input, shape index: {}]
  %s7 = inlined_call_operand.hbm [shape: f32[2,8], index: 7, kind: output, shape index: {}]
  %s8 = sld [smem:[#allocation0]]
  $region46: #{tpu_custom_call.1} parent=0
    _
  %s10 = ssub.s32 1, %s8
  %s11 = scalar_select 0, %s10, %s8
  $region1: #{tpu_custom_call.1} parent=0
    #allocation2 [shape = 'u8[4096]{0}', space=vmem, size = 0x1000, scoped, tag = 'input window, operand 0, single buffered']
    #allocation3 [shape = 's32[1]{0}', space=sflag, size = 0x4, scoped, tag = 'scoped memory for tpu_custom_call.1']
    #allocation4 [shape = 's32[1]{0}', space=sflag, size = 0x4, scoped, tag = 'scoped memory for tpu_custom_call.1']
    #allocation5 [shape = 'u8[512]{0}', space=vmem, size = 0x400, scoped, tag = 'input window, operand 4, single buffered']
    #allocation6 [shape = 's32[1]{0}', space=sflag, size = 0x4, scoped, tag = 'scoped memory for tpu_custom_call.1']
    #allocation7 [shape = 'u8[4096]{0}', space=vmem, size = 0x1000, scoped, tag = 'output window, operand 0, single buffered']
    %12 = vsyncpa [#allocation3], 0
    %13 = vsyncpa [#allocation6], 0
    %14 = vsyncpa [#allocation4], 0
    // Predicated region
    $region2: #{tpu_custom_call.1} parent=1 // pred_check
      _
    $region3: #{tpu_custom_call.1} parent=1 // pred_check_branch
      %16 = sbr.rel (0) target = $region5
    $region4: #{tpu_custom_call.1} parent=1 // pred_region
      %s18 = ssub.s32 128, 32
      %19 = vsyncadd [#allocation3], %s18
      %s20 = sshll.u32 [#allocation2], 4
      %s21 = int_to_ptr.vmem [resolvable:$true] %s20
      %26 = dma.hbm_to_vmem [thread:$0]  %s0, 32, %s21, [#allocation3], 32, 32, 2
    $region5: #{tpu_custom_call.1} parent=1 // pred_fallthru
      _
    // Predicated region
    $region6: #{tpu_custom_call.1} parent=1 // pred_check
      _
    $region7: #{tpu_custom_call.1} parent=1 // pred_check_branch
      %28 = sbr.rel (0) target = $region9
    $region8: #{tpu_custom_call.1} parent=1 // pred_region
      _
    $region9: #{tpu_custom_call.1} parent=1 // pred_fallthru
      _
    // Predicated region
    $region10: #{tpu_custom_call.1} parent=1 // pred_check
      _
    $region11: #{tpu_custom_call.1} parent=1 // pred_check_branch
      %30 = sbr.rel (0) target = $region13
    $region12: #{tpu_custom_call.1} parent=1 // pred_region
      _
    $region13: #{tpu_custom_call.1} parent=1 // pred_fallthru
      _
    // Predicated region
    $region14: #{tpu_custom_call.1} parent=1 // pred_check
      _
    $region15: #{tpu_custom_call.1} parent=1 // pred_check_branch
      %32 = sbr.rel (0) target = $region17
    $region16: #{tpu_custom_call.1} parent=1 // pred_region
      _
    $region17: #{tpu_custom_call.1} parent=1 // pred_fallthru
      _
    // Predicated region
    $region18: #{tpu_custom_call.1} parent=1 // pred_check
      _
    $region19: #{tpu_custom_call.1} parent=1 // pred_check_branch
      %34 = sbr.rel (0) target = $region21
    $region20: #{tpu_custom_call.1} parent=1 // pred_region
      %s36 = ssub.s32 16, 16
      %37 = vsyncadd [#allocation6], %s36
      %s39 = sshll.u32 [#allocation5], 4
      %s40 = int_to_ptr.vmem [resolvable:$true] %s39
      %42 = dma.hbm_to_vmem [thread:$0]  %s4, 16, %s40, [#allocation6]
    $region21: #{tpu_custom_call.1} parent=1 // pred_fallthru
      _
    // Predicated region
    $region22: #{tpu_custom_call.1} parent=1 // pred_check
      _
    $region23: #{tpu_custom_call.1} parent=1 // pred_check_branch
      %44 = sbr.rel (0) target = $region25
    $region24: #{tpu_custom_call.1} parent=1 // pred_region
      _
    $region25: #{tpu_custom_call.1} parent=1 // pred_fallthru
      _
    // Predicated region
    $region26: #{tpu_custom_call.1} parent=1 // pred_check
      _
    $region27: #{tpu_custom_call.1} parent=1 // pred_check_branch
      %46 = sbr.rel (0) target = $region29
    $region28: #{tpu_custom_call.1} parent=1 // pred_region
      _
    $region29: #{tpu_custom_call.1} parent=1 // pred_fallthru
      _
    // Predicated region
    $region30: #{tpu_custom_call.1} parent=1 // pred_check
      _
    $region31: #{tpu_custom_call.1} parent=1 // pred_check_branch
      %48 = sbr.rel (0) target = $region33
    $region32: #{tpu_custom_call.1} parent=1 // pred_region
      %49 = dma.done [#allocation3], 128
    $region33: #{tpu_custom_call.1} parent=1 // pred_fallthru
      _
    // Predicated region
    $region34: #{tpu_custom_call.1} parent=1 // pred_check
      _
    $region35: #{tpu_custom_call.1} parent=1 // pred_check_branch
      %51 = sbr.rel (0) target = $region37
    $region36: #{tpu_custom_call.1} parent=1 // pred_region
      %52 = dma.done [#allocation6], 16
    $region37: #{tpu_custom_call.1} parent=1 // pred_fallthru
      _
    %v54 = vld [vmem:[#allocation2] sm:$0xff]
    %v55 = vld [vmem:[%s1] sm:$0xf]
    %v56 = vld [vmem:[%s1 + $0x4] sm:$0xf]
    %v57 = vld [vmem:[%s2] sm:$0x1]
    %v58 = vpack.c.bf16 %v54, %v54
    %v60 = vlaneseq
    %v61 = vshrl.u32 %v60, 7
    %v62 = vsub.s32 0, %v61
    %v63 = vrot.slane %v57, %v62
    %v67 = vunpack.c.l.b16 %v55
    %v68 = vunpack.c.l.b16 %v56
    %v69 = vpack.c.b16 %v68, %v67
    %vm71 = vcmask 130048
    %v73 = vsel %vm71, %v58, 0
    %75 = vmatprep.subr.bf16.mxu0 0
    %76 = vmatpush1.bf16.msra.mxu0 0
    %77 = vmatprep.subr.bf16.mxu0 0
    %78 = vmatpush1.bf16.msra.mxu0 0
    %79 = vmatprep.subr.bf16.mxu0 0
    %80 = vmatpush1.bf16.msra.mxu0 0
    %81 = vmatprep.subr.bf16.mxu0 0
    %82 = vmatpush1.bf16.msra.mxu0 0
    %83 = vmatprep.subr.bf16.mxu0 0
    %84 = vmatpush1.bf16.msra.mxu0 0
    %85 = vmatprep.subr.bf16.mxu0 0
    %86 = vmatpush1.bf16.msra.mxu0 0
    %87 = vmatprep.subr.bf16.mxu0 0
    %88 = vmatpush1.bf16.msra.mxu0 0
    %89 = vmatprep.subr.bf16.mxu0 0
    %90 = vmatpush1.bf16.msra.mxu0 %v69
    %91 = vmatprep.subr.bf16.mxu0 0
    %92 = vmatpush2.bf16.msra.mxu0 0
    %93 = vmatprep.subr.bf16.mxu0 0
    %94 = vmatpush2.bf16.msra.mxu0 0
    %95 = vmatprep.subr.bf16.mxu0 0
    %96 = vmatpush2.bf16.msra.mxu0 0
    %97 = vmatprep.subr.bf16.mxu0 0
    %98 = vmatpush2.bf16.msra.mxu0 0
    %99 = vmatprep.subr.bf16.mxu0 0
    %100 = vmatpush2.bf16.msra.mxu0 0
    %101 = vmatprep.subr.bf16.mxu0 0
    %102 = vmatpush2.bf16.msra.mxu0 0
    %103 = vmatprep.subr.bf16.mxu0 0
    %104 = vmatpush2.bf16.msra.mxu0 0
    %105 = vmatprep.subr.bf16.mxu0 0
    %106 = vmatpush2.bf16.msra.mxu0 0
    %107 = vmatprep.mubr.bf16.mxu0 0
    %108 = vmatmul.mubr.bf16.gmra.mxu0 %v73
    %v109 = vpop.f32.mrf.mxu0
    %v110 = vadd.f32 %v63, %v109
    %v111 = vpop.f32.mrf.mxu0
    %v112 = vpop.f32.mrf.mxu0
    %v113 = vpop.f32.mrf.mxu0
    %114 = vdwg.mxu0
    %v115 = vmax.f32 %v110, 0.0
    %v116 = vld [vmem:[%s3] sm:$0xf]
    %v117 = vld [vmem:[%s3 + $0x4] sm:$0xf]
    %v118 = vld [vmem:[%s3 + $0x8] sm:$0xf]
    %v119 = vld [vmem:[%s3 + $0xc] sm:$0xf]
    %v120 = vld [vmem:[%s3 + $0x10] sm:$0xf]
    %v121 = vld [vmem:[%s3 + $0x14] sm:$0xf]
    %v122 = vld [vmem:[%s3 + $0x18] sm:$0xf]
    %v123 = vld [vmem:[%s3 + $0x1c] sm:$0xf]
    %v124 = vld [vmem:[%s3 + $0x20] sm:$0xf]
    %v125 = vld [vmem:[%s3 + $0x24] sm:$0xf]
    %v126 = vld [vmem:[%s3 + $0x28] sm:$0xf]
    %v127 = vld [vmem:[%s3 + $0x2c] sm:$0xf]
    %v128 = vld [vmem:[%s3 + $0x30] sm:$0xf]
    %v129 = vld [vmem:[%s3 + $0x34] sm:$0xf]
    %v130 = vld [vmem:[%s3 + $0x38] sm:$0xf]
    %v131 = vld [vmem:[%s3 + $0x3c] sm:$0xf]
    %v132 = vld [vmem:[#allocation5] sm:$0x1]
    %v133 = vpack.c.bf16 %v115, %v115
    %v135 = vlaneseq
    %v136 = vshrl.u32 %v135, 7
    %v137 = vsub.s32 0, %v136
    %v138 = vrot.slane %v132, %v137
    %v156 = vunpack.c.l.b16 %v116
    %v157 = vunpack.c.l.b16 %v117
    %v158 = vunpack.c.l.b16 %v118
    %v159 = vunpack.c.l.b16 %v119
    %v160 = vunpack.c.l.b16 %v120
    %v161 = vunpack.c.l.b16 %v121
    %v162 = vunpack.c.l.b16 %v122
    %v163 = vunpack.c.l.b16 %v123
    %v164 = vunpack.c.l.b16 %v124
    %v165 = vunpack.c.l.b16 %v125
    %v166 = vunpack.c.l.b16 %v126
    %v167 = vunpack.c.l.b16 %v127
    %v168 = vunpack.c.l.b16 %v128
    %v169 = vunpack.c.l.b16 %v129
    %v170 = vunpack.c.l.b16 %v130
    %v171 = vunpack.c.l.b16 %v131
    %v172 = vpack.c.b16 %v157, %v156
    %v173 = vpack.c.b16 %v159, %v158
    %v174 = vpack.c.b16 %v161, %v160
    %v175 = vpack.c.b16 %v163, %v162
    %v176 = vpack.c.b16 %v165, %v164
    %v177 = vpack.c.b16 %v167, %v166
    %v178 = vpack.c.b16 %v169, %v168
    %v179 = vpack.c.b16 %v171, %v170
    %188 = vmatprep.subr.bf16.mxu0 0
    %189 = vmatpush1.bf16.msra.mxu0 %v179
    %190 = vmatprep.subr.bf16.mxu0 0
    %191 = vmatpush1.bf16.msra.mxu0 %v178
    %192 = vmatprep.subr.bf16.mxu0 0
    %193 = vmatpush1.bf16.msra.mxu0 %v177
    %194 = vmatprep.subr.bf16.mxu0 0
    %195 = vmatpush1.bf16.msra.mxu0 %v176
    %196 = vmatprep.subr.bf16.mxu0 0
    %197 = vmatpush1.bf16.msra.mxu0 %v175
    %198 = vmatprep.subr.bf16.mxu0 0
    %199 = vmatpush1.bf16.msra.mxu0 %v174
    %200 = vmatprep.subr.bf16.mxu0 0
    %201 = vmatpush1.bf16.msra.mxu0 %v173
    %202 = vmatprep.subr.bf16.mxu0 0
    %203 = vmatpush1.bf16.msra.mxu0 %v172
    %204 = vmatprep.subr.bf16.mxu0 0
    %205 = vmatpush2.bf16.msra.mxu0 0
    %206 = vmatprep.subr.bf16.mxu0 0
    %207 = vmatpush2.bf16.msra.mxu0 0
    %208 = vmatprep.subr.bf16.mxu0 0
    %209 = vmatpush2.bf16.msra.mxu0 0
    %210 = vmatprep.subr.bf16.mxu0 0
    %211 = vmatpush2.bf16.msra.mxu0 0
    %212 = vmatprep.subr.bf16.mxu0 0
    %213 = vmatpush2.bf16.msra.mxu0 0
    %214 = vmatprep.subr.bf16.mxu0 0
    %215 = vmatpush2.bf16.msra.mxu0 0
    %216 = vmatprep.subr.bf16.mxu0 0
    %217 = vmatpush2.bf16.msra.mxu0 0
    %218 = vmatprep.subr.bf16.mxu0 0
    %219 = vmatpush2.bf16.msra.mxu0 0
    %220 = vmatprep.mubr.bf16.mxu0 0
    %221 = vmatmul.mubr.bf16.gmra.mxu0 %v133
    %v222 = vpop.f32.mrf.mxu0
    %v223 = vadd.f32 %v138, %v222
    %v224 = vpop.f32.mrf.mxu0
    %v225 = vpop.f32.mrf.mxu0
    %v226 = vpop.f32.mrf.mxu0
    %227 = vdwg.mxu0
    %v228 = vmax.f32 %v223, 0.0
    %v229 = vld [vmem:[%s5] sm:$0xf]
    %v230 = vld [vmem:[%s5 + $0x4] sm:$0xf]
    %v231 = vld [vmem:[%s5 + $0x8] sm:$0xf]
    %v232 = vld [vmem:[%s5 + $0xc] sm:$0xf]
    %v233 = vld [vmem:[%s5 + $0x10] sm:$0xf]
    %v234 = vld [vmem:[%s5 + $0x14] sm:$0xf]
    %v235 = vld [vmem:[%s5 + $0x18] sm:$0xf]
    %v236 = vld [vmem:[%s5 + $0x1c] sm:$0xf]
    %v237 = vld [vmem:[%s5 + $0x20] sm:$0xf]
    %v238 = vld [vmem:[%s5 + $0x24] sm:$0xf]
    %v239 = vld [vmem:[%s5 + $0x28] sm:$0xf]
    %v240 = vld [vmem:[%s5 + $0x2c] sm:$0xf]
    %v241 = vld [vmem:[%s5 + $0x30] sm:$0xf]
    %v242 = vld [vmem:[%s5 + $0x34] sm:$0xf]
    %v243 = vld [vmem:[%s5 + $0x38] sm:$0xf]
    %v244 = vld [vmem:[%s5 + $0x3c] sm:$0xf]
    %v245 = vld [vmem:[%s6] sm:$0x1]
    %v246 = vpack.c.bf16 %v228, %v228
    %v248 = vlaneseq
    %v249 = vshrl.u32 %v248, 7
    %v250 = vsub.s32 0, %v249
    %v251 = vrot.slane %v245, %v250
    %v269 = vunpack.c.l.b16 %v229
    %v270 = vunpack.c.l.b16 %v230
    %v271 = vunpack.c.l.b16 %v231
    %v272 = vunpack.c.l.b16 %v232
    %v273 = vunpack.c.l.b16 %v233
    %v274 = vunpack.c.l.b16 %v234
    %v275 = vunpack.c.l.b16 %v235
    %v276 = vunpack.c.l.b16 %v236
    %v277 = vunpack.c.l.b16 %v237
    %v278 = vunpack.c.l.b16 %v238
    %v279 = vunpack.c.l.b16 %v239
    %v280 = vunpack.c.l.b16 %v240
    %v281 = vunpack.c.l.b16 %v241
    %v282 = vunpack.c.l.b16 %v242
    %v283 = vunpack.c.l.b16 %v243
    %v284 = vunpack.c.l.b16 %v244
    %v285 = vpack.c.b16 %v270, %v269
    %v286 = vpack.c.b16 %v272, %v271
    %v287 = vpack.c.b16 %v274, %v273
    %v288 = vpack.c.b16 %v276, %v275
    %v289 = vpack.c.b16 %v278, %v277
    %v290 = vpack.c.b16 %v280, %v279
    %v291 = vpack.c.b16 %v282, %v281
    %v292 = vpack.c.b16 %v284, %v283
    %301 = vmatprep.subr.bf16.mxu0 0
    %302 = vmatpush1.bf16.msra.mxu0 %v292
    %303 = vmatprep.subr.bf16.mxu0 0
    %304 = vmatpush1.bf16.msra.mxu0 %v291
    %305 = vmatprep.subr.bf16.mxu0 0
    %306 = vmatpush1.bf16.msra.mxu0 %v290
    %307 = vmatprep.subr.bf16.mxu0 0
    %308 = vmatpush1.bf16.msra.mxu0 %v289
    %309 = vmatprep.subr.bf16.mxu0 0
    %310 = vmatpush1.bf16.msra.mxu0 %v288
    %311 = vmatprep.subr.bf16.mxu0 0
    %312 = vmatpush1.bf16.msra.mxu0 %v287
    %313 = vmatprep.subr.bf16.mxu0 0
    %314 = vmatpush1.bf16.msra.mxu0 %v286
    %315 = vmatprep.subr.bf16.mxu0 0
    %316 = vmatpush1.bf16.msra.mxu0 %v285
    %317 = vmatprep.subr.bf16.mxu0 0
    %318 = vmatpush2.bf16.msra.mxu0 0
    %319 = vmatprep.subr.bf16.mxu0 0
    %320 = vmatpush2.bf16.msra.mxu0 0
    %321 = vmatprep.subr.bf16.mxu0 0
    %322 = vmatpush2.bf16.msra.mxu0 0
    %323 = vmatprep.subr.bf16.mxu0 0
    %324 = vmatpush2.bf16.msra.mxu0 0
    %325 = vmatprep.subr.bf16.mxu0 0
    %326 = vmatpush2.bf16.msra.mxu0 0
    %327 = vmatprep.subr.bf16.mxu0 0
    %328 = vmatpush2.bf16.msra.mxu0 0
    %329 = vmatprep.subr.bf16.mxu0 0
    %330 = vmatpush2.bf16.msra.mxu0 0
    %331 = vmatprep.subr.bf16.mxu0 0
    %332 = vmatpush2.bf16.msra.mxu0 0
    %333 = vmatprep.mubr.bf16.mxu0 0
    %334 = vmatmul.mubr.bf16.gmra.mxu0 %v246
    %v335 = vpop.f32.mrf.mxu0
    %v336 = vadd.f32 %v251, %v335
    %v337 = vpop.f32.mrf.mxu0
    %v338 = vpop.f32.mrf.mxu0
    %v339 = vpop.f32.mrf.mxu0
    %340 = vdwg.mxu0
    %vm341 = vcmask 64512
    %342 = vst.msk [vmem:[#allocation7] sm:$0xff] %vm341, %v336
    // Predicated region
    $region38: #{tpu_custom_call.1} parent=1 // pred_check
      _
    $region39: #{tpu_custom_call.1} parent=1 // pred_check_branch
      %344 = sbr.rel (0) target = $region41
    $region40: #{tpu_custom_call.1} parent=1 // pred_region
      %s346 = ssub.s32 128, 32
      %347 = vsyncadd [#allocation4], %s346
      %s348 = sshll.u32 [#allocation7], 4
      %s349 = int_to_ptr.vmem [resolvable:$true] %s348
      %354 = dma.vmem_to_hbm [thread:$0]  %s349, 32, %s7, [#allocation4], 32, 32, 2
    $region41: #{tpu_custom_call.1} parent=1 // pred_fallthru
      _
    // Predicated region
    $region42: #{tpu_custom_call.1} parent=1 // pred_check
      _
    $region43: #{tpu_custom_call.1} parent=1 // pred_check_branch
      %356 = sbr.rel (0) target = $region45
    $region44: #{tpu_custom_call.1} parent=1 // pred_region
      %357 = dma.done [#allocation4], 128
    $region45: #{tpu_custom_call.1} parent=1 // pred_fallthru
      _
    %358 = vsyncpa [#allocation3], 1
    %359 = vsyncpa [#allocation6], 1
    %360 = vsyncpa [#allocation4], 1

</llo_original>
